<compile_context>
chip_gen: v7x
topology: tpu7x:2x2x1
jax: 0.10.0
libtpu: 0.0.40
codegen_flags: <defaults>
</compile_context>

<pallas_src>
import functools

import jax
import jax.numpy as jnp
from jax.experimental import pallas as pl
from jax.experimental.pallas import tpu as pltpu

_INV_SQRT2 = 0.7071067811865476

# Per-generation (tm_max, tf_max, tm_align) budgets.
_TILE_BUDGETS = {
    "v5e": (384, 1024, 128),
    "v5p": (512, 1024, 128),
    "v6e": (768, 1024, 256),
    "v7x": (512, 512, 256),
}
_DEFAULT_BUDGET = (512, 512, 128)


def _mlp_kernel(x_ref, w1_ref, b1_ref, w2_ref, b2_ref, o_ref, acc_ref, *, n_j):
    # x_ref:  (tm, n_embd)      row tile of the input
    # w1_ref: (n_embd, tf)      column tile of W1
    # b1_ref: (1, tf)           bias tile for the hidden layer
    # w2_ref: (tf, n_embd)      row tile of W2
    # b2_ref: (1, n_embd)       output bias
    # o_ref:  (tm, n_embd)      output row tile (resident across the j axis)
    # acc_ref:(tm, n_embd) f32  accumulator scratch (unused when n_j == 1)
    j = pl.program_id(1)

    # First linear (native-dtype MXU matmul, f32 accumulation) + exact GELU.
    h = jnp.dot(x_ref[...], w1_ref[...], preferred_element_type=jnp.float32)
    h = h + b1_ref[...].astype(jnp.float32)
    h = 0.5 * h * (1.0 + jax.lax.erf(h * _INV_SQRT2))

    # Dropout: identity (eval mode).
    # TODO(synk): training-mode dropout (pltpu.prng_seed + prng_random_bits
    # Bernoulli mask scaled by 1/(1-p)) is not implemented.

    # Second linear: partial contraction over this n_ff tile.  Cast the GELU
    # output back to the weight dtype so the matmul stays on the fast (bf16)
    # MXU path when weights are bf16.
    partial = jnp.dot(h.astype(w2_ref.dtype), w2_ref[...],
                      preferred_element_type=jnp.float32)

    if n_j == 1:
        # Whole hidden dim in one tile: no accumulator traffic at all.
        out = partial + b2_ref[...].astype(jnp.float32)
        o_ref[...] = out.astype(o_ref.dtype)
    else:
        @pl.when(j == 0)
        def _():
            acc_ref[...] = partial            # store only, no load

        @pl.when(jnp.logical_and(j > 0, j < n_j - 1))
        def _():
            acc_ref[...] += partial           # load + add + store

        @pl.when(j == n_j - 1)
        def _():
            # Fold the last partial + bias straight into the output store;
            # saves one full accumulator write+read per row tile.
            out = acc_ref[...] + partial + b2_ref[...].astype(jnp.float32)
            o_ref[...] = out.astype(o_ref.dtype)


def _round_up(x, m):
    return ((x + m - 1) // m) * m


def _tpu_generation():
    try:
        kind = jax.devices()[0].device_kind.lower()
    except Exception:
        return None
    if "v7" in kind:
        return "v7x"
    if "v6" in kind:
        return "v6e"
    if "v5" in kind and ("lite" in kind or "v5e" in kind):
        return "v5e"
    if "v5" in kind:
        return "v5p"
    return None


def _pick_ff_tile(n_ff, tf_max):
    """Choose the n_ff tile and (possibly zero-padded) n_ff extent.

    Prefers the largest 128-multiple divisor of n_ff <= tf_max; if none
    exists, uses tf_max and pads n_ff with zeros (exact: GELU(0) = 0, and the
    padded W2 rows are zero, so padded columns contribute nothing).
    """
    if n_ff <= tf_max:
        return n_ff, n_ff
    tf_max = max(128, (tf_max // 128) * 128)
    tf = tf_max
    while tf >= 128:
        if n_ff % tf == 0:
            return tf, n_ff
        tf -= 128
    return tf_max, _round_up(n_ff, tf_max)


def _vmem_limit_bytes(gen):
    # Leave ~25% headroom: ~48 MiB on v7x (64 MiB/TC), ~96 MiB on v5e/v6e.
    try:
        return int(pltpu.get_tpu_info().vmem_capacity_bytes * 3 // 4)
    except Exception:
        pass
    if gen == "v7x":
        return 48 * 1024 * 1024
    if gen in ("v5e", "v5p", "v6e"):
        return 96 * 1024 * 1024
    return 64 * 1024 * 1024


@jax.jit
def mlp_forward(x, w1, b1, w2, b2):
    """x: [B, T, n_embd]; w1: [n_embd, n_ff]; w2: [n_ff, n_embd].

    For production, pass x/w1/w2 in bf16 (cast in the caller): the kernel
    runs the matmuls in the native dtype with f32 accumulation.
    """
    B, T, n_embd = x.shape
    n_ff = w1.shape[1]
    M = B * T

    gen = _tpu_generation()
    tm_max, tf_max, tm_align = _TILE_BUDGETS.get(gen, _DEFAULT_BUDGET)

    # Row tile: MXU-native multiple (256 / 128) when M is large enough;
    # 8-aligned fallback only for tiny M.
    if M >= tm_align:
        tm = min(tm_max, _round_up(M, tm_align))
    else:
        tm = _round_up(M, 8)
    M_pad = _round_up(M, tm)

    # v7x has 2 TensorCores and the M axis is "parallel": make sure there are
    # at least 2 row tiles so both cores get work on small-M / decode shapes.
    if gen == "v7x":
        while M_pad // tm < 2 and tm > 8:
            tm = max(8, _round_up(tm // 2, 8))
            M_pad = _round_up(M, tm)

    tf, n_ff_pad = _pick_ff_tile(n_ff, tf_max)
    n_j = n_ff_pad // tf

    x2d = x.reshape(M, n_embd)
    if M_pad != M:
        x2d = jnp.pad(x2d, ((0, M_pad - M), (0, 0)))
    if n_ff_pad != n_ff:
        w1 = jnp.pad(w1, ((0, 0), (0, n_ff_pad - n_ff)))
        b1 = jnp.pad(b1, ((0, n_ff_pad - n_ff),))
        w2 = jnp.pad(w2, ((0, n_ff_pad - n_ff), (0, 0)))
    b1_2d = b1.reshape(1, n_ff_pad)
    b2_2d = b2.reshape(1, n_embd)

    kernel = functools.partial(_mlp_kernel, n_j=n_j)

    # NOTE: if profiling on v6e still shows exposed weight DMA (wall >> MXU
    # cycles) after the larger tm, add pipeline_mode=pl.Buffered(3) to the W1
    # and W2 BlockSpecs only (not on v7x: its 48 MiB budget has no headroom).
    out2d = pl.pallas_call(
        kernel,
        out_shape=jax.ShapeDtypeStruct((M_pad, n_embd), x.dtype),
        grid_spec=pltpu.PrefetchScalarGridSpec(
            num_scalar_prefetch=0,
            grid=(M_pad // tm, n_j),                 # rows parallel, n_ff reduction
            in_specs=[
                pl.BlockSpec((tm, n_embd), lambda i, j: (i, 0)),   # x row tile
                pl.BlockSpec((n_embd, tf), lambda i, j: (0, j)),   # W1 col tile
                pl.BlockSpec((1, tf), lambda i, j: (0, j)),        # b1 tile
                pl.BlockSpec((tf, n_embd), lambda i, j: (j, 0)),   # W2 row tile
                pl.BlockSpec((1, n_embd), lambda i, j: (0, 0)),    # b2
            ],
            out_specs=pl.BlockSpec((tm, n_embd), lambda i, j: (i, 0)),
            scratch_shapes=[pltpu.VMEM((tm, n_embd), jnp.float32)],
        ),
        compiler_params=pltpu.CompilerParams(
            dimension_semantics=("parallel", "arbitrary"),
            vmem_limit_bytes=_vmem_limit_bytes(gen),
        ),
    )(x2d, w1, b1_2d, w2, b2_2d)

    return out2d[:M].reshape(B, T, n_embd)


def _ref_mlp(x, w1, b1, w2, b2):
    h = jnp.einsum("btd,df->btf", x.astype(jnp.float32),
                   w1.astype(jnp.float32)) + b1
    h = 0.5 * h * (1.0 + jax.lax.erf(h * _INV_SQRT2))
    o = jnp.einsum("btf,fd->btd", h, w2.astype(jnp.float32)) + b2
    return o.astype(x.dtype)


if __name__ == "__main__":
    # Small shapes consistent with the module: n_embd=32, n_ff=128 (4x).
    B, T, n_embd, n_ff = 2, 8, 32, 128

    key = jax.random.PRNGKey(0)
    kx, kw1, kb1, kw2, kb2 = jax.random.split(key, 5)

    x = jax.random.normal(kx, (B, T, n_embd), dtype=jnp.float32)

    # Deterministic init mimicking nn.Linear: U(-1/sqrt(fan_in), 1/sqrt(fan_in)).
    lim1 = 1.0 / jnp.sqrt(n_embd)
    lim2 = 1.0 / jnp.sqrt(n_ff)
    w1 = jax.random.uniform(kw1, (n_embd, n_ff), jnp.float32, -lim1, lim1)
    b1 = jax.random.uniform(kb1, (n_ff,), jnp.float32, -lim1, lim1)
    w2 = jax.random.uniform(kw2, (n_ff, n_embd), jnp.float32, -lim2, lim2)
    b2 = jax.random.uniform(kb2, (n_embd,), jnp.float32, -lim2, lim2)

    out = mlp_forward(x, w1, b1, w2, b2)
    out = jax.block_until_ready(out)

    ref = _ref_mlp(x, w1, b1, w2, b2)
    assert out.shape == (B, T, n_embd)
    assert jnp.allclose(out, ref, atol=1e-5, rtol=1e-5), "mismatch vs reference"

    print("KERNEL_OK")
</pallas_src>

<mosaic_0001>
module attributes {stable_mosaic.version = 11 : i64} {
  func.func @_mlp_kernel(%arg0: i32, %arg1: i32, %arg2: memref<16x32xf32, #tpu.memory_space<vmem>>, %arg3: memref<32x128xf32, #tpu.memory_space<vmem>>, %arg4: memref<1x128xf32, #tpu.memory_space<vmem>>, %arg5: memref<128x32xf32, #tpu.memory_space<vmem>>, %arg6: memref<1x32xf32, #tpu.memory_space<vmem>>, %arg7: memref<16x32xf32, #tpu.memory_space<vmem>>, %arg8: memref<16x32xf32, #tpu.memory_space<vmem>>) attributes {dimension_semantics = [#tpu.dimension_semantics<parallel>, #tpu.dimension_semantics<arbitrary>], iteration_bounds = array<i64: 1, 1>, scalar_prefetch = 0 : i64, scratch_operands = 1 : i64, tpu.core_type = #tpu.core_type<tc>, window_params = [{transform_indices = @transform_0, window_bounds = array<i64: 16, 32>}, {transform_indices = @transform_1, window_bounds = array<i64: 32, 128>}, {transform_indices = @transform_2, window_bounds = array<i64: 1, 128>}, {transform_indices = @transform_3, window_bounds = array<i64: 128, 32>}, {pipeline_mode = #tpu.pipeline_mode<synchronous>, transform_indices = @transform_4, window_bounds = array<i64: 1, 32>}, {transform_indices = @transform_5, window_bounds = array<i64: 16, 32>}]} {
    %c0 = arith.constant 0 : index
    %c0_0 = arith.constant 0 : index
    %0 = vector.load %arg2[%c0, %c0_0] : memref<16x32xf32, #tpu.memory_space<vmem>>, vector<16x32xf32>
    %c0_1 = arith.constant 0 : index
    %c0_2 = arith.constant 0 : index
    %1 = vector.load %arg3[%c0_1, %c0_2] : memref<32x128xf32, #tpu.memory_space<vmem>>, vector<32x128xf32>
    %cst = arith.constant dense<0.000000e+00> : vector<16x128xf32>
    %2 = tpu.matmul %0, %1, %cst {dimension_numbers = #tpu.dot_dimension_numbers<[1], [0], [0], [1], [0, 0, 1, 1], [], []>} : vector<16x32xf32>, vector<32x128xf32>, vector<16x128xf32> -> vector<16x128xf32>
    %c0_3 = arith.constant 0 : index
    %c0_4 = arith.constant 0 : index
    %3 = vector.load %arg4[%c0_3, %c0_4] : memref<1x128xf32, #tpu.memory_space<vmem>>, vector<1x128xf32>
    %4 = vector.broadcast %3 : vector<1x128xf32> to vector<16x128xf32>
    %5 = arith.addf %2, %4 : vector<16x128xf32>
    %cst_5 = arith.constant 5.000000e-01 : f32
    %6 = vector.broadcast %cst_5 : f32 to vector<16x128xf32>
    %7 = arith.mulf %6, %5 : vector<16x128xf32>
    %cst_6 = arith.constant 0.707106769 : f32
    %8 = vector.broadcast %cst_6 : f32 to vector<16x128xf32>
    %9 = arith.mulf %5, %8 : vector<16x128xf32>
    %10 = math.erf %9 : vector<16x128xf32>
    %cst_7 = arith.constant 1.000000e+00 : f32
    %11 = vector.broadcast %cst_7 : f32 to vector<16x128xf32>
    %12 = arith.addf %11, %10 : vector<16x128xf32>
    %13 = arith.mulf %7, %12 : vector<16x128xf32>
    %c0_8 = arith.constant 0 : index
    %c0_9 = arith.constant 0 : index
    %14 = vector.load %arg5[%c0_8, %c0_9] : memref<128x32xf32, #tpu.memory_space<vmem>>, vector<128x32xf32>
    %cst_10 = arith.constant dense<0.000000e+00> : vector<16x32xf32>
    %15 = tpu.matmul %13, %14, %cst_10 {dimension_numbers = #tpu.dot_dimension_numbers<[1], [0], [0], [1], [0, 0, 1, 1], [], []>} : vector<16x128xf32>, vector<128x32xf32>, vector<16x32xf32> -> vector<16x32xf32>
    %c0_11 = arith.constant 0 : index
    %c0_12 = arith.constant 0 : index
    %16 = vector.load %arg6[%c0_11, %c0_12] : memref<1x32xf32, #tpu.memory_space<vmem>>, vector<1x32xf32>
    %17 = vector.broadcast %16 : vector<1x32xf32> to vector<16x32xf32>
    %18 = arith.addf %15, %17 : vector<16x32xf32>
    %c0_13 = arith.constant 0 : index
    %c0_14 = arith.constant 0 : index
    %19 = vector.load %arg7[%c0_13, %c0_14] : memref<16x32xf32, #tpu.memory_space<vmem>>, vector<16x32xf32>
    tpu.vector_store %arg7[%c0_13, %c0_14], %18 {strides = array<i32>} : memref<16x32xf32, #tpu.memory_space<vmem>>, vector<16x32xf32>,
    return
  }
  func.func @transform_0(%arg0: i32, %arg1: i32) -> (i32, i32) {
    %c0_i32 = arith.constant 0 : i32
    %c0_i32_0 = arith.constant 0 : i32
    return %arg0, %c0_i32 : i32, i32
  }
  func.func @transform_1(%arg0: i32, %arg1: i32) -> (i32, i32) {
    %c0_i32 = arith.constant 0 : i32
    %c0_i32_0 = arith.constant 0 : i32
    return %c0_i32, %arg1 : i32, i32
  }
  func.func @transform_2(%arg0: i32, %arg1: i32) -> (i32, i32) {
    %c0_i32 = arith.constant 0 : i32
    %c0_i32_0 = arith.constant 0 : i32
    return %c0_i32, %arg1 : i32, i32
  }
  func.func @transform_3(%arg0: i32, %arg1: i32) -> (i32, i32) {
    %c0_i32 = arith.constant 0 : i32
    %c0_i32_0 = arith.constant 0 : i32
    return %arg1, %c0_i32 : i32, i32
  }
  func.func @transform_4(%arg0: i32, %arg1: i32) -> (i32, i32) {
    %c0_i32 = arith.constant 0 : i32
    %c0_i32_0 = arith.constant 0 : i32
    %c0_i32_1 = arith.constant 0 : i32
    return %c0_i32, %c0_i32_0 : i32, i32
  }
  func.func @transform_5(%arg0: i32, %arg1: i32) -> (i32, i32) {
    %c0_i32 = arith.constant 0 : i32
    %c0_i32_0 = arith.constant 0 : i32
    return %arg0, %c0_i32 : i32, i32
  }
}

</mosaic_0001>

<llo_original>
// kernel: mlp_forward.1
$region0: #{mlp_forward.1}
  #allocation0 [shape = 'u32[]', space=smem, size = 0x4, offset = 0x4, fixed_abs, tag = 'smem constant byte address 0x4 - core index']
  #allocation1 [shape = 'u32[144,128]{1,0:T(1,128)}', space=vmem, size = 0x12000, scoped, tag = 'internal scratch']
  #allocation2 [shape = 'f32[16,32]{1,0:T(8,128)}', space=vmem, size = 0x2000, scoped, tag = 'scratch operand']
  %s0 = inlined_call_operand.hbm [shape: f32[16,32], index: 0, kind: input, shape index: {}]
  %s1 = inlined_call_operand.hbm [shape: f32[32,128], index: 1, kind: input, shape index: {}]
  %s2 = inlined_call_operand.hbm [shape: f32[1,128], index: 2, kind: input, shape index: {}]
  %s3 = inlined_call_operand.hbm [shape: f32[128,32], index: 3, kind: input, shape index: {}]
  %s4 = inlined_call_operand.hbm [shape: f32[1,32], index: 4, kind: input, shape index: {}]
  %s5 = inlined_call_operand.hbm [shape: f32[16,32], index: 5, kind: output, shape index: {}]
  %s6 = sld [smem:[#allocation0]]
  $region50: #{mlp_forward.1} parent=0
    _
  %s8 = ssub.s32 1, %s6
  %s9 = scalar_select 0, %s8, %s6
  $region1: #{mlp_forward.1} parent=0
    #allocation3 [shape = 'u8[8192]{0}', space=vmem, size = 0x2000, scoped, tag = 'input window, operand 0, single buffered']
    #allocation4 [shape = 's32[1]{0}', space=sflag, size = 0x4, scoped, tag = 'scoped memory for mlp_forward.1']
    #allocation5 [shape = 's32[1]{0}', space=sflag, size = 0x4, scoped, tag = 'scoped memory for mlp_forward.1']
    #allocation6 [shape = 'u8[16384]{0}', space=vmem, size = 0x4000, scoped, tag = 'input window, operand 1, single buffered']
    #allocation7 [shape = 's32[1]{0}', space=sflag, size = 0x4, scoped, tag = 'scoped memory for mlp_forward.1']
    #allocation8 [shape = 'u8[512]{0}', space=vmem, size = 0x400, scoped, tag = 'input window, operand 2, single buffered']
    #allocation9 [shape = 'u8[65536]{0}', space=vmem, size = 0x10000, scoped, tag = 'input window, operand 3, single buffered']
    #allocation10 [shape = 's32[1]{0}', space=sflag, size = 0x4, scoped, tag = 'scoped memory for mlp_forward.1']
    #allocation11 [shape = 'u8[512]{0}', space=vmem, size = 0x400, scoped, tag = 'input window, operand 4, single buffered']
    #allocation12 [shape = 'u8[8192]{0}', space=vmem, size = 0x2000, scoped, tag = 'output window, operand 0, single buffered']
    %10 = vsyncpa [#allocation4], 0
    %11 = vsyncpa [#allocation7], 0
    %12 = vsyncpa [#allocation10], 0
    %13 = vsyncpa [#allocation5], 0
    // Predicated region
    $region2: #{mlp_forward.1} parent=1 // pred_check
      _
    $region3: #{mlp_forward.1} parent=1 // pred_check_branch
      %15 = sbr.rel (0) target = $region5
    $region4: #{mlp_forward.1} parent=1 // pred_region
      %s17 = ssub.s32 256, 256
      %18 = vsyncadd [#allocation4], %s17
      %s19 = sshll.u32 [#allocation3], 4
      %s20 = int_to_ptr.vmem [resolvable:$true] %s19
      %25 = dma.hbm_to_vmem [thread:$0]  %s0, 256, %s20, [#allocation4], 128, 128, 8
    $region5: #{mlp_forward.1} parent=1 // pred_fallthru
      _
    // Predicated region
    $region6: #{mlp_forward.1} parent=1 // pred_check
      _
    $region7: #{mlp_forward.1} parent=1 // pred_check_branch
      %27 = sbr.rel (0) target = $region9
    $region8: #{mlp_forward.1} parent=1 // pred_region
      %s29 = ssub.s32 512, 512
      %30 = vsyncadd [#allocation7], %s29
      %s31 = sshll.u32 [#allocation6], 4
      %s32 = int_to_ptr.vmem [resolvable:$true] %s31
      %37 = dma.hbm_to_vmem [thread:$0]  %s1, 512, %s32, [#allocation7], 128, 128, 8
    $region9: #{mlp_forward.1} parent=1 // pred_fallthru
      _
    // Predicated region
    $region10: #{mlp_forward.1} parent=1 // pred_check
      _
    $region11: #{mlp_forward.1} parent=1 // pred_check_branch
      %39 = sbr.rel (0) target = $region13
    $region12: #{mlp_forward.1} parent=1 // pred_region
      %s41 = ssub.s32 16, 16
      %42 = vsyncadd [#allocation7], %s41
      %s44 = sshll.u32 [#allocation8], 4
      %s45 = int_to_ptr.vmem [resolvable:$true] %s44
      %47 = dma.hbm_to_vmem [thread:$0]  %s2, 16, %s45, [#allocation7]
    $region13: #{mlp_forward.1} parent=1 // pred_fallthru
      _
    // Predicated region
    $region14: #{mlp_forward.1} parent=1 // pred_check
      _
    $region15: #{mlp_forward.1} parent=1 // pred_check_branch
      %49 = sbr.rel (0) target = $region17
    $region16: #{mlp_forward.1} parent=1 // pred_region
      %s51 = ssub.s32 2048, 2048
      %52 = vsyncadd [#allocation10], %s51
      %s53 = sshll.u32 [#allocation9], 4
      %s54 = int_to_ptr.vmem [resolvable:$true] %s53
      %59 = dma.hbm_to_vmem [thread:$0]  %s3, 2048, %s54, [#allocation10], 128, 128, 8
    $region17: #{mlp_forward.1} parent=1 // pred_fallthru
      _
    // Predicated region
    $region18: #{mlp_forward.1} parent=1 // pred_check
      _
    $region19: #{mlp_forward.1} parent=1 // pred_check_branch
      %61 = sbr.rel (0) target = $region21
    $region20: #{mlp_forward.1} parent=1 // pred_region
      %s63 = ssub.s32 16, 16
      %64 = vsyncadd [#allocation10], %s63
      %s66 = sshll.u32 [#allocation11], 4
      %s67 = int_to_ptr.vmem [resolvable:$true] %s66
      %69 = dma.hbm_to_vmem [thread:$0]  %s4, 16, %s67, [#allocation10]
    $region21: #{mlp_forward.1} parent=1 // pred_fallthru
      _
    // Predicated region
    $region22: #{mlp_forward.1} parent=1 // pred_check
      _
    $region23: #{mlp_forward.1} parent=1 // pred_check_branch
      %71 = sbr.rel (0) target = $region25
    $region24: #{mlp_forward.1} parent=1 // pred_region
      %72 = dma.done [#allocation4], 256
    $region25: #{mlp_forward.1} parent=1 // pred_fallthru
      _
    // Predicated region
    $region26: #{mlp_forward.1} parent=1 // pred_check
      _
    $region27: #{mlp_forward.1} parent=1 // pred_check_branch
      %74 = sbr.rel (0) target = $region29
    $region28: #{mlp_forward.1} parent=1 // pred_region
      %75 = dma.done [#allocation7], 512
    $region29: #{mlp_forward.1} parent=1 // pred_fallthru
      _
    // Predicated region
    $region30: #{mlp_forward.1} parent=1 // pred_check
      _
    $region31: #{mlp_forward.1} parent=1 // pred_check_branch
      %77 = sbr.rel (0) target = $region33
    $region32: #{mlp_forward.1} parent=1 // pred_region
      %78 = dma.done [#allocation7], 16
    $region33: #{mlp_forward.1} parent=1 // pred_fallthru
      _
    // Predicated region
    $region34: #{mlp_forward.1} parent=1 // pred_check
      _
    $region35: #{mlp_forward.1} parent=1 // pred_check_branch
      %80 = sbr.rel (0) target = $region37
    $region36: #{mlp_forward.1} parent=1 // pred_region
      %81 = dma.done [#allocation10], 2048
    $region37: #{mlp_forward.1} parent=1 // pred_fallthru
      _
    // Predicated region
    $region38: #{mlp_forward.1} parent=1 // pred_check
      _
    $region39: #{mlp_forward.1} parent=1 // pred_check_branch
      %83 = sbr.rel (0) target = $region41
    $region40: #{mlp_forward.1} parent=1 // pred_region
      %84 = dma.done [#allocation10], 16
    $region41: #{mlp_forward.1} parent=1 // pred_fallthru
      _
    %v85 = vld [vmem:[#allocation3] sm:$0xff]
    %v86 = vld [vmem:[#allocation3 + $0x8] sm:$0xff]
    %v87 = vld [vmem:[#allocation6] sm:$0xff]
    %v88 = vld [vmem:[#allocation6 + $0x8] sm:$0xff]
    %v89 = vld [vmem:[#allocation6 + $0x10] sm:$0xff]
    %v90 = vld [vmem:[#allocation6 + $0x18] sm:$0xff]
    %v91 = vld [vmem:[#allocation8] sm:$0x1]
    %v93 = vlaneseq
    %v94 = vshrl.u32 %v93, 7
    %v95 = vsub.s32 0, %v94
    %v96 = vrot.slane %v91, %v95
    %vm98 = vcmask 261120
    %v100 = vsel %vm98, %v85, 0
    %v103 = vsel %vm98, %v86, 0
    %105 = vmatprep.subr.mxu0 0.0
    %106 = vmatpush1.msra.mxu0 %v87
    %107 = vmatprep.subr.mxu0 0.0
    %108 = vmatpush1.msra.mxu0 %v88
    %109 = vmatprep.subr.mxu0 0.0
    %110 = vmatpush1.msra.mxu0 %v89
    %111 = vmatprep.subr.mxu0 0.0
    %112 = vmatpush1.msra.mxu0 %v90
    %113 = vmatprep.subr.mxu0 0.0
    %114 = vmatpush1.msra.mxu0 0.0
    %115 = vmatprep.subr.mxu0 0.0
    %116 = vmatpush1.msra.mxu0 0.0
    %117 = vmatprep.subr.mxu0 0.0
    %118 = vmatpush1.msra.mxu0 0.0
    %119 = vmatprep.subr.mxu0 0.0
    %120 = vmatpush1.msra.mxu0 0.0
    %121 = vmatprep.subr.mxu0 0.0
    %122 = vmatpush1.msra.mxu0 0.0
    %123 = vmatprep.subr.mxu0 0.0
    %124 = vmatpush1.msra.mxu0 0.0
    %125 = vmatprep.subr.mxu0 0.0
    %126 = vmatpush1.msra.mxu0 0.0
    %127 = vmatprep.subr.mxu0 0.0
    %128 = vmatpush1.msra.mxu0 0.0
    %129 = vmatprep.subr.mxu0 0.0
    %130 = vmatpush1.msra.mxu0 0.0
    %131 = vmatprep.subr.mxu0 0.0
    %132 = vmatpush1.msra.mxu0 0.0
    %133 = vmatprep.subr.mxu0 0.0
    %134 = vmatpush1.msra.mxu0 0.0
    %135 = vmatprep.subr.mxu0 0.0
    %136 = vmatpush1.msra.mxu0 0.0
    %137 = vmatprep.subr.mxu0 0.0
    %138 = vmatpush1.msra.mxu0 0.0
    %139 = vmatprep.subr.mxu0 0.0
    %140 = vmatpush1.msra.mxu0 0.0
    %141 = vmatprep.subr.mxu0 0.0
    %142 = vmatpush1.msra.mxu0 0.0
    %143 = vmatprep.subr.mxu0 0.0
    %144 = vmatpush1.msra.mxu0 0.0
    %145 = vmatprep.subr.mxu0 0.0
    %146 = vmatpush1.msra.mxu0 0.0
    %147 = vmatprep.subr.mxu0 0.0
    %148 = vmatpush1.msra.mxu0 0.0
    %149 = vmatprep.subr.mxu0 0.0
    %150 = vmatpush1.msra.mxu0 0.0
    %151 = vmatprep.subr.mxu0 0.0
    %152 = vmatpush1.msra.mxu0 0.0
    %153 = vmatprep.subr.mxu0 0.0
    %154 = vmatpush1.msra.mxu0 0.0
    %155 = vmatprep.subr.mxu0 0.0
    %156 = vmatpush1.msra.mxu0 0.0
    %157 = vmatprep.subr.mxu0 0.0
    %158 = vmatpush1.msra.mxu0 0.0
    %159 = vmatprep.subr.mxu0 0.0
    %160 = vmatpush1.msra.mxu0 0.0
    %161 = vmatprep.subr.mxu0 0.0
    %162 = vmatpush1.msra.mxu0 0.0
    %163 = vmatprep.subr.mxu0 0.0
    %164 = vmatpush1.msra.mxu0 0.0
    %165 = vmatprep.subr.mxu0 0.0
    %166 = vmatpush1.msra.mxu0 0.0
    %167 = vmatprep.subr.mxu0 0.0
    %168 = vmatpush1.msra.mxu0 0.0
    %169 = vmatprep.mubr.f32.mxu0 0.0
    %170 = vmatmul.mubr.f32.gmra.mrb[0].mxu0 %v100
    %v171 = vpop.f32.mrb[0].mxu0
    %v172 = vadd.f32 %v96, %v171
    %v173 = vpop.f32.mrb[0].mxu0
    %174 = vmatprep.mubr.f32.mxu0 0.0
    %175 = vmatmul.mubr.f32.gmra.mrb[0].mxu0 %v103
    %v176 = vpop.f32.mrb[0].mxu0
    %v177 = vadd.f32 %v96, %v176
    %v178 = vpop.f32.mrb[0].mxu0
    %179 = vdwg.mxu0
    %v180 = vmul.f32 %v172, 0.5
    %v181 = vmul.f32 %v177, 0.5
    %v182 = vmul.f32 %v172, 0.70710677
    %v183 = vmul.f32 %v177, 0.70710677
    %v184 = verf.f32.pop %v182
    %v185 = verf.f32.pop %v183
    %v186 = vadd.f32 %v184, 1.0
    %v187 = vadd.f32 %v185, 1.0
    %v188 = vmul.f32 %v180, %v186
    %v189 = vmul.f32 %v181, %v187
    %v190 = vld [vmem:[#allocation9] sm:$0xff]
    %v191 = vld [vmem:[#allocation9 + $0x8] sm:$0xff]
    %v192 = vld [vmem:[#allocation9 + $0x10] sm:$0xff]
    %v193 = vld [vmem:[#allocation9 + $0x18] sm:$0xff]
    %v194 = vld [vmem:[#allocation9 + $0x20] sm:$0xff]
    %v195 = vld [vmem:[#allocation9 + $0x28] sm:$0xff]
    %v196 = vld [vmem:[#allocation9 + $0x30] sm:$0xff]
    %v197 = vld [vmem:[#allocation9 + $0x38] sm:$0xff]
    %v198 = vld [vmem:[#allocation9 + $0x40] sm:$0xff]
    %v199 = vld [vmem:[#allocation9 + $0x48] sm:$0xff]
    %v200 = vld [vmem:[#allocation9 + $0x50] sm:$0xff]
    %v201 = vld [vmem:[#allocation9 + $0x58] sm:$0xff]
    %v202 = vld [vmem:[#allocation9 + $0x60] sm:$0xff]
    %v203 = vld [vmem:[#allocation9 + $0x68] sm:$0xff]
    %v204 = vld [vmem:[#allocation9 + $0x70] sm:$0xff]
    %v205 = vld [vmem:[#allocation9 + $0x78] sm:$0xff]
    %v206 = vld [vmem:[#allocation11] sm:$0x1]
    %v208 = vlaneseq
    %v209 = vshrl.u32 %v208, 7
    %v210 = vsub.s32 0, %v209
    %v211 = vrot.slane %v206, %v210
    %213 = vmatprep.subr.mxu0 0.0
    %214 = vmatpush1.msra.mxu0 %v190
    %215 = vmatprep.subr.mxu0 0.0
    %216 = vmatpush1.msra.mxu0 %v191
    %217 = vmatprep.subr.mxu0 0.0
    %218 = vmatpush1.msra.mxu0 %v192
    %219 = vmatprep.subr.mxu0 0.0
    %220 = vmatpush1.msra.mxu0 %v193
    %221 = vmatprep.subr.mxu0 0.0
    %222 = vmatpush1.msra.mxu0 %v194
    %223 = vmatprep.subr.mxu0 0.0
    %224 = vmatpush1.msra.mxu0 %v195
    %225 = vmatprep.subr.mxu0 0.0
    %226 = vmatpush1.msra.mxu0 %v196
    %227 = vmatprep.subr.mxu0 0.0
    %228 = vmatpush1.msra.mxu0 %v197
    %229 = vmatprep.subr.mxu0 0.0
    %230 = vmatpush1.msra.mxu0 %v198
    %231 = vmatprep.subr.mxu0 0.0
    %232 = vmatpush1.msra.mxu0 %v199
    %233 = vmatprep.subr.mxu0 0.0
    %234 = vmatpush1.msra.mxu0 %v200
    %235 = vmatprep.subr.mxu0 0.0
    %236 = vmatpush1.msra.mxu0 %v201
    %237 = vmatprep.subr.mxu0 0.0
    %238 = vmatpush1.msra.mxu0 %v202
    %239 = vmatprep.subr.mxu0 0.0
    %240 = vmatpush1.msra.mxu0 %v203
    %241 = vmatprep.subr.mxu0 0.0
    %242 = vmatpush1.msra.mxu0 %v204
    %243 = vmatprep.subr.mxu0 0.0
    %244 = vmatpush1.msra.mxu0 %v205
    %245 = vmatprep.subr.mxu0 0.0
    %246 = vmatpush1.msra.mxu0 0.0
    %247 = vmatprep.subr.mxu0 0.0
    %248 = vmatpush1.msra.mxu0 0.0
    %249 = vmatprep.subr.mxu0 0.0
    %250 = vmatpush1.msra.mxu0 0.0
    %251 = vmatprep.subr.mxu0 0.0
    %252 = vmatpush1.msra.mxu0 0.0
    %253 = vmatprep.subr.mxu0 0.0
    %254 = vmatpush1.msra.mxu0 0.0
    %255 = vmatprep.subr.mxu0 0.0
    %256 = vmatpush1.msra.mxu0 0.0
    %257 = vmatprep.subr.mxu0 0.0
    %258 = vmatpush1.msra.mxu0 0.0
    %259 = vmatprep.subr.mxu0 0.0
    %260 = vmatpush1.msra.mxu0 0.0
    %261 = vmatprep.subr.mxu0 0.0
    %262 = vmatpush1.msra.mxu0 0.0
    %263 = vmatprep.subr.mxu0 0.0
    %264 = vmatpush1.msra.mxu0 0.0
    %265 = vmatprep.subr.mxu0 0.0
    %266 = vmatpush1.msra.mxu0 0.0
    %267 = vmatprep.subr.mxu0 0.0
    %268 = vmatpush1.msra.mxu0 0.0
    %269 = vmatprep.subr.mxu0 0.0
    %270 = vmatpush1.msra.mxu0 0.0
    %271 = vmatprep.subr.mxu0 0.0
    %272 = vmatpush1.msra.mxu0 0.0
    %273 = vmatprep.subr.mxu0 0.0
    %274 = vmatpush1.msra.mxu0 0.0
    %275 = vmatprep.subr.mxu0 0.0
    %276 = vmatpush1.msra.mxu0 0.0
    %277 = vmatprep.mubr.f32.mxu0 0.0
    %278 = vmatmul.mubr.f32.gmra.mrb[0].mxu0 %v188
    %v279 = vpop.f32.mrb[0].mxu0
    %v280 = vadd.f32 %v211, %v279
    %v281 = vpop.f32.mrb[0].mxu0
    %282 = vmatprep.mubr.f32.mxu0 0.0
    %283 = vmatmul.mubr.f32.gmra.mrb[0].mxu0 %v189
    %v284 = vpop.f32.mrb[0].mxu0
    %v285 = vadd.f32 %v211, %v284
    %v286 = vpop.f32.mrb[0].mxu0
    %287 = vdwg.mxu0
    %288 = vst.msk [vmem:[#allocation12] sm:$0xff] %vm98, %v280
    %289 = vst.msk [vmem:[#allocation12 + $0x8] sm:$0xff] %vm98, %v285
    // Predicated region
    $region42: #{mlp_forward.1} parent=1 // pred_check
      _
    $region43: #{mlp_forward.1} parent=1 // pred_check_branch
      %291 = sbr.rel (0) target = $region45
    $region44: #{mlp_forward.1} parent=1 // pred_region
      %s293 = ssub.s32 256, 256
      %294 = vsyncadd [#allocation5], %s293
      %s295 = sshll.u32 [#allocation12], 4
      %s296 = int_to_ptr.vmem [resolvable:$true] %s295
      %301 = dma.vmem_to_hbm [thread:$0]  %s296, 256, %s5, [#allocation5], 128, 128, 8
    $region45: #{mlp_forward.1} parent=1 // pred_fallthru
      _
    // Predicated region
    $region46: #{mlp_forward.1} parent=1 // pred_check
      _
    $region47: #{mlp_forward.1} parent=1 // pred_check_branch
      %303 = sbr.rel (0) target = $region49
    $region48: #{mlp_forward.1} parent=1 // pred_region
      %304 = dma.done [#allocation5], 256
    $region49: #{mlp_forward.1} parent=1 // pred_fallthru
      _
    %305 = vsyncpa [#allocation4], 1
    %306 = vsyncpa [#allocation7], 1
    %307 = vsyncpa [#allocation10], 1
    %308 = vsyncpa [#allocation5], 1

</llo_original>
